<compile_context>
chip_gen: v5e
topology: v5e:2x2
jax: 0.10.0
libtpu: 0.0.40
codegen_flags: <defaults>
</compile_context>

<pallas_src>
import functools

import jax
import jax.numpy as jnp
from jax.experimental import pallas as pl
from jax.experimental.pallas import tpu as pltpu

LANE = 128
SUBLANE = 8


# --------------------------------------------------------------------------
# Single fused kernel: whole forward pass, everything resident in VMEM.
# --------------------------------------------------------------------------
def fused_forward_kernel(a_ref, x_ref, gw1_ref, gb1_ref, gw2_ref, gb2_ref,
                         p_ref, fw1_ref, fb1_ref, fw2_ref, fb2_ref,
                         o_ref, *, out_dim):
    f32 = jnp.float32
    bf = jnp.bfloat16

    a = a_ref[...]                                            # (N, N) bf16

    # ---- GCN layer 1 (right-associated): H1 = relu(Â @ (X W1) + b1) ----
    xw1 = jnp.dot(x_ref[...], gw1_ref[...], preferred_element_type=f32)
    h1 = jnp.dot(a, xw1.astype(bf), preferred_element_type=f32) + gb1_ref[...]
    h1 = jnp.maximum(h1, 0.0).astype(bf)

    # ---- GCN layer 2: H2 = (Â @ H1) W2 + b2 ----
    agg2 = jnp.dot(a, h1, preferred_element_type=f32)
    h2 = jnp.dot(agg2.astype(bf), gw2_ref[...],
                 preferred_element_type=f32) + gb2_ref[...]
    h2 = h2.astype(bf)

    # ---- global mean pool: G = P @ H2 ----
    g = jnp.dot(p_ref[...], h2, preferred_element_type=f32).astype(bf)

    # ---- FFN: Linear -> ReLU -> Linear ----
    f = jnp.dot(g, fw1_ref[...], preferred_element_type=f32) + fb1_ref[...]
    f = jnp.maximum(f, 0.0)
    f = jnp.dot(f.astype(bf), fw2_ref[...],
                preferred_element_type=f32) + fb2_ref[...]

    # ---- masked log_softmax over the real class lanes ----
    lane = jax.lax.broadcasted_iota(jnp.int32, f.shape, 1)
    f = jnp.where(lane < out_dim, f, -1e30)
    m = jnp.max(f, axis=1, keepdims=True)
    s = f - m
    lse = jnp.log(jnp.sum(jnp.exp(s), axis=1, keepdims=True))
    o_ref[...] = (s - lse).astype(o_ref.dtype)


def fused_forward(a_bf, x_bf, gw1, gb1, gw2, gb2, p_bf, fw1, fb1, fw2, fb2,
                  *, out_dim):
    n_pad = a_bf.shape[0]
    g_pad = p_bf.shape[0]
    cin_p = x_bf.shape[1]
    gh_p = gw1.shape[1]
    go_p = gw2.shape[1]
    fh_p = fw1.shape[1]
    fo_p = fw2.shape[1]

    flops = 2 * (n_pad * cin_p * gh_p          # X @ W1
                 + n_pad * n_pad * gh_p        # Â @ XW1
                 + n_pad * n_pad * gh_p        # Â @ H1
                 + n_pad * gh_p * go_p         # agg2 @ W2
                 + g_pad * n_pad * go_p        # P @ H2
                 + g_pad * go_p * fh_p         # FFN layer 1
                 + g_pad * fh_p * fo_p)        # FFN layer 2
    in_bytes = 2 * (n_pad * n_pad + n_pad * cin_p + cin_p * gh_p
                    + gh_p * go_p + g_pad * n_pad + go_p * fh_p + fh_p * fo_p)
    in_bytes += 4 * (gh_p + go_p + fh_p + fo_p)
    out_bytes = 4 * g_pad * fo_p
    # Working set (inputs + f32 intermediates) with 4x headroom, clamped well
    # under v7x's 64 MiB physical VMEM per TensorCore.
    work_bytes = (in_bytes + out_bytes
                  + 4 * (n_pad * gh_p * 3 + n_pad * go_p + g_pad * fh_p
                         + g_pad * fo_p * 2))
    vmem_limit = int(min(max(4 * work_bytes, 8 << 20), 48 << 20))

    vmem_spec = pl.BlockSpec(memory_space=pltpu.MemorySpace.VMEM)

    return pl.pallas_call(
        functools.partial(fused_forward_kernel, out_dim=out_dim),
        out_shape=jax.ShapeDtypeStruct((g_pad, fo_p), jnp.float32),
        in_specs=[vmem_spec] * 11,
        out_specs=vmem_spec,
        compiler_params=pltpu.CompilerParams(vmem_limit_bytes=vmem_limit),
        cost_estimate=pl.CostEstimate(
            flops=flops,
            transcendentals=g_pad * (fo_p + 1),
            bytes_accessed=in_bytes + out_bytes),
    )(a_bf, x_bf, gw1, gb1, gw2, gb2, p_bf, fw1, fb1, fw2, fb2)


# --------------------------------------------------------------------------
# Full forward wrapper (bf16 casts for the MXU happen here).
# --------------------------------------------------------------------------
@functools.partial(jax.jit, static_argnames=("out_dim",))
def pyg_model_forward(a_hat, x, pool_mat, params, *, out_dim):
    gw1, gb1, gw2, gb2, fw1, fb1, fw2, fb2 = params
    bf = jnp.bfloat16
    return fused_forward(
        a_hat.astype(bf), x.astype(bf),
        gw1.astype(bf), gb1, gw2.astype(bf), gb2,
        pool_mat.astype(bf),
        fw1.astype(bf), fb1, fw2.astype(bf), fb2,
        out_dim=out_dim)


# --------------------------------------------------------------------------
# Plain-JAX glue: graph densification, pooling matrix, params, padding.
# --------------------------------------------------------------------------
def build_normalized_adjacency(edge_index, num_nodes):
    """Â = D^{-1/2}(A+I)D^{-1/2}, scatter-add edges + remaining self-loops."""
    src, dst = edge_index
    adj = jnp.zeros((num_nodes, num_nodes), jnp.float32)
    adj = adj.at[dst, src].add(1.0)
    diag = jnp.diagonal(adj)
    adj = adj + jnp.diag(jnp.where(diag == 0, 1.0, 0.0))
    deg = jnp.sum(adj, axis=1)
    dinv = jnp.where(deg > 0, 1.0 / jnp.sqrt(deg), 0.0)
    return adj * dinv[:, None] * dinv[None, :]


def build_mean_pool_matrix(batch, num_graphs, num_nodes):
    one_hot = (batch[None, :] == jnp.arange(num_graphs)[:, None]).astype(jnp.float32)
    counts = jnp.sum(one_hot, axis=1, keepdims=True)
    return one_hot / jnp.maximum(counts, 1.0)


def glorot(key, shape):
    fan_in, fan_out = shape
    limit = jnp.sqrt(6.0 / (fan_in + fan_out))
    return jax.random.uniform(key, shape, jnp.float32, -limit, limit)


def init_params(key, in_ch, gcn_hidden, gcn_out, ffn_hidden, ffn_out):
    ks = jax.random.split(key, 4)
    return (glorot(ks[0], (in_ch, gcn_hidden)), jnp.zeros((1, gcn_hidden), jnp.float32),
            glorot(ks[1], (gcn_hidden, gcn_out)), jnp.zeros((1, gcn_out), jnp.float32),
            glorot(ks[2], (gcn_out, ffn_hidden)), jnp.zeros((1, ffn_hidden), jnp.float32),
            glorot(ks[3], (ffn_hidden, ffn_out)), jnp.zeros((1, ffn_out), jnp.float32))


def round_up(v, m):
    return ((v + m - 1) // m) * m


def pad2d(x, rows, cols):
    r, c = x.shape
    return jnp.pad(x, ((0, rows - r), (0, cols - c)))


# --------------------------------------------------------------------------
if __name__ == "__main__":
    key = jax.random.PRNGKey(0)
    k_x, k_p = jax.random.split(key, 2)

    # 16 graphs x 16 nodes = 256 nodes (block-diagonal Â), tiny working set.
    num_graphs, nodes_per_graph = 16, 16
    num_nodes = num_graphs * nodes_per_graph
    in_ch, gcn_hidden, gcn_out, ffn_hidden, ffn_out = 4, 32, 16, 32, 8

    # data.x
    x = jax.random.normal(k_x, (num_nodes, in_ch), jnp.float32)
    # data.edge_index: bidirectional ring inside each graph (no dup / self loops)
    base = jnp.arange(num_nodes)
    graph_of = base // nodes_per_graph
    nxt = jnp.where((base + 1) // nodes_per_graph == graph_of,
                    base + 1, graph_of * nodes_per_graph)
    edge_index = jnp.stack([jnp.concatenate([base, nxt]),
                            jnp.concatenate([nxt, base])])
    batch = graph_of                                             # data.batch

    a_hat = build_normalized_adjacency(edge_index, num_nodes)
    pool_mat = build_mean_pool_matrix(batch, num_graphs, num_nodes)
    params = init_params(k_p, in_ch, gcn_hidden, gcn_out, ffn_hidden, ffn_out)

    # Pad: nodes -> multiple of LANE, graphs -> multiple of 8, features -> 128.
    n_pad = round_up(num_nodes, LANE)
    g_pad = round_up(num_graphs, SUBLANE)
    cin_p = round_up(in_ch, LANE)
    gh_p = round_up(gcn_hidden, LANE)
    go_p = round_up(gcn_out, LANE)
    fh_p = round_up(ffn_hidden, LANE)
    fo_p = round_up(ffn_out, LANE)

    a_p = pad2d(a_hat, n_pad, n_pad)
    x_p = pad2d(x, n_pad, cin_p)
    pool_p = pad2d(pool_mat, g_pad, n_pad)
    gw1, gb1, gw2, gb2, fw1, fb1, fw2, fb2 = params
    params_p = (pad2d(gw1, cin_p, gh_p), pad2d(gb1, 1, gh_p),
                pad2d(gw2, gh_p, go_p), pad2d(gb2, 1, go_p),
                pad2d(fw1, go_p, fh_p), pad2d(fb1, 1, fh_p),
                pad2d(fw2, fh_p, fo_p), pad2d(fb2, 1, fo_p))

    out_padded = pyg_model_forward(a_p, x_p, pool_p, params_p, out_dim=ffn_out)
    out_padded = jax.block_until_ready(out_padded)
    out = out_padded[:num_graphs, :ffn_out]

    # Pure-JAX reference on the identical bf16/f32 dtype path.
    def ref_forward():
        bf, f32 = jnp.bfloat16, jnp.float32
        pgw1, pgb1, pgw2, pgb2, pfw1, pfb1, pfw2, pfb2 = params_p
        a = a_p.astype(bf)
        xw1 = jnp.dot(x_p.astype(bf), pgw1.astype(bf),
                      preferred_element_type=f32)
        h1 = jnp.maximum(jnp.dot(a, xw1.astype(bf),
                                 preferred_element_type=f32) + pgb1, 0.0).astype(bf)
        agg2 = jnp.dot(a, h1, preferred_element_type=f32)
        h2 = (jnp.dot(agg2.astype(bf), pgw2.astype(bf),
                      preferred_element_type=f32) + pgb2).astype(bf)
        g = jnp.dot(pool_p.astype(bf), h2, preferred_element_type=f32).astype(bf)
        f = jnp.maximum(jnp.dot(g, pfw1.astype(bf),
                                preferred_element_type=f32) + pfb1, 0.0)
        f = jnp.dot(f.astype(bf), pfw2.astype(bf),
                    preferred_element_type=f32) + pfb2
        return jax.nn.log_softmax(f[:num_graphs, :ffn_out], axis=1)

    ref = jax.block_until_ready(ref_forward())
    assert out.shape == (num_graphs, ffn_out)
    assert jnp.allclose(out, ref, atol=2e-2, rtol=2e-2), (
        float(jnp.max(jnp.abs(out - ref))))

    print("KERNEL_OK")
</pallas_src>

<mosaic_0001>
module attributes {stable_mosaic.version = 11 : i64} {
  func.func @fused_forward_kernel(%arg0: memref<256x256xbf16, #tpu.memory_space<vmem>>, %arg1: memref<256x128xbf16, #tpu.memory_space<vmem>>, %arg2: memref<128x128xbf16, #tpu.memory_space<vmem>>, %arg3: memref<1x128xf32, #tpu.memory_space<vmem>>, %arg4: memref<128x128xbf16, #tpu.memory_space<vmem>>, %arg5: memref<1x128xf32, #tpu.memory_space<vmem>>, %arg6: memref<16x256xbf16, #tpu.memory_space<vmem>>, %arg7: memref<128x128xbf16, #tpu.memory_space<vmem>>, %arg8: memref<1x128xf32, #tpu.memory_space<vmem>>, %arg9: memref<128x128xbf16, #tpu.memory_space<vmem>>, %arg10: memref<1x128xf32, #tpu.memory_space<vmem>>, %arg11: memref<16x128xf32, #tpu.memory_space<vmem>>) attributes {dimension_semantics = [], scalar_prefetch = 0 : i64, scratch_operands = 0 : i64, tpu.core_type = #tpu.core_type<tc>} {
    %c0 = arith.constant 0 : index
    %c0_0 = arith.constant 0 : index
    %0 = vector.load %arg0[%c0, %c0_0] : memref<256x256xbf16, #tpu.memory_space<vmem>>, vector<256x256xbf16>
    %c0_1 = arith.constant 0 : index
    %c0_2 = arith.constant 0 : index
    %1 = vector.load %arg1[%c0_1, %c0_2] : memref<256x128xbf16, #tpu.memory_space<vmem>>, vector<256x128xbf16>
    %c0_3 = arith.constant 0 : index
    %c0_4 = arith.constant 0 : index
    %2 = vector.load %arg2[%c0_3, %c0_4] : memref<128x128xbf16, #tpu.memory_space<vmem>>, vector<128x128xbf16>
    %cst = arith.constant dense<0.000000e+00> : vector<256x128xf32>
    %3 = tpu.matmul %1, %2, %cst {dimension_numbers = #tpu.dot_dimension_numbers<[1], [0], [0], [1], [0, 0, 1, 1], [], []>} : vector<256x128xbf16>, vector<128x128xbf16>, vector<256x128xf32> -> vector<256x128xf32>
    %4 = arith.truncf %3 : vector<256x128xf32> to vector<256x128xbf16>
    %cst_5 = arith.constant dense<0.000000e+00> : vector<256x128xf32>
    %5 = tpu.matmul %0, %4, %cst_5 {dimension_numbers = #tpu.dot_dimension_numbers<[1], [0], [0], [1], [0, 0, 1, 1], [], []>} : vector<256x256xbf16>, vector<256x128xbf16>, vector<256x128xf32> -> vector<256x128xf32>
    %c0_6 = arith.constant 0 : index
    %c0_7 = arith.constant 0 : index
    %6 = vector.load %arg3[%c0_6, %c0_7] : memref<1x128xf32, #tpu.memory_space<vmem>>, vector<1x128xf32>
    %7 = vector.broadcast %6 : vector<1x128xf32> to vector<256x128xf32>
    %8 = arith.addf %5, %7 : vector<256x128xf32>
    %cst_8 = arith.constant 0.000000e+00 : f32
    %9 = vector.broadcast %cst_8 : f32 to vector<256x128xf32>
    %10 = arith.maximumf %8, %9 : vector<256x128xf32>
    %11 = arith.truncf %10 : vector<256x128xf32> to vector<256x128xbf16>
    %cst_9 = arith.constant dense<0.000000e+00> : vector<256x128xf32>
    %12 = tpu.matmul %0, %11, %cst_9 {dimension_numbers = #tpu.dot_dimension_numbers<[1], [0], [0], [1], [0, 0, 1, 1], [], []>} : vector<256x256xbf16>, vector<256x128xbf16>, vector<256x128xf32> -> vector<256x128xf32>
    %13 = arith.truncf %12 : vector<256x128xf32> to vector<256x128xbf16>
    %c0_10 = arith.constant 0 : index
    %c0_11 = arith.constant 0 : index
    %14 = vector.load %arg4[%c0_10, %c0_11] : memref<128x128xbf16, #tpu.memory_space<vmem>>, vector<128x128xbf16>
    %cst_12 = arith.constant dense<0.000000e+00> : vector<256x128xf32>
    %15 = tpu.matmul %13, %14, %cst_12 {dimension_numbers = #tpu.dot_dimension_numbers<[1], [0], [0], [1], [0, 0, 1, 1], [], []>} : vector<256x128xbf16>, vector<128x128xbf16>, vector<256x128xf32> -> vector<256x128xf32>
    %c0_13 = arith.constant 0 : index
    %c0_14 = arith.constant 0 : index
    %16 = vector.load %arg5[%c0_13, %c0_14] : memref<1x128xf32, #tpu.memory_space<vmem>>, vector<1x128xf32>
    %17 = vector.broadcast %16 : vector<1x128xf32> to vector<256x128xf32>
    %18 = arith.addf %15, %17 : vector<256x128xf32>
    %19 = arith.truncf %18 : vector<256x128xf32> to vector<256x128xbf16>
    %c0_15 = arith.constant 0 : index
    %c0_16 = arith.constant 0 : index
    %20 = vector.load %arg6[%c0_15, %c0_16] : memref<16x256xbf16, #tpu.memory_space<vmem>>, vector<16x256xbf16>
    %cst_17 = arith.constant dense<0.000000e+00> : vector<16x128xf32>
    %21 = tpu.matmul %20, %19, %cst_17 {dimension_numbers = #tpu.dot_dimension_numbers<[1], [0], [0], [1], [0, 0, 1, 1], [], []>} : vector<16x256xbf16>, vector<256x128xbf16>, vector<16x128xf32> -> vector<16x128xf32>
    %22 = arith.truncf %21 : vector<16x128xf32> to vector<16x128xbf16>
    %c0_18 = arith.constant 0 : index
    %c0_19 = arith.constant 0 : index
    %23 = vector.load %arg7[%c0_18, %c0_19] : memref<128x128xbf16, #tpu.memory_space<vmem>>, vector<128x128xbf16>
    %cst_20 = arith.constant dense<0.000000e+00> : vector<16x128xf32>
    %24 = tpu.matmul %22, %23, %cst_20 {dimension_numbers = #tpu.dot_dimension_numbers<[1], [0], [0], [1], [0, 0, 1, 1], [], []>} : vector<16x128xbf16>, vector<128x128xbf16>, vector<16x128xf32> -> vector<16x128xf32>
    %c0_21 = arith.constant 0 : index
    %c0_22 = arith.constant 0 : index
    %25 = vector.load %arg8[%c0_21, %c0_22] : memref<1x128xf32, #tpu.memory_space<vmem>>, vector<1x128xf32>
    %26 = vector.broadcast %25 : vector<1x128xf32> to vector<16x128xf32>
    %27 = arith.addf %24, %26 : vector<16x128xf32>
    %cst_23 = arith.constant 0.000000e+00 : f32
    %28 = vector.broadcast %cst_23 : f32 to vector<16x128xf32>
    %29 = arith.maximumf %27, %28 : vector<16x128xf32>
    %30 = arith.truncf %29 : vector<16x128xf32> to vector<16x128xbf16>
    %c0_24 = arith.constant 0 : index
    %c0_25 = arith.constant 0 : index
    %31 = vector.load %arg9[%c0_24, %c0_25] : memref<128x128xbf16, #tpu.memory_space<vmem>>, vector<128x128xbf16>
    %cst_26 = arith.constant dense<0.000000e+00> : vector<16x128xf32>
    %32 = tpu.matmul %30, %31, %cst_26 {dimension_numbers = #tpu.dot_dimension_numbers<[1], [0], [0], [1], [0, 0, 1, 1], [], []>} : vector<16x128xbf16>, vector<128x128xbf16>, vector<16x128xf32> -> vector<16x128xf32>
    %c0_27 = arith.constant 0 : index
    %c0_28 = arith.constant 0 : index
    %33 = vector.load %arg10[%c0_27, %c0_28] : memref<1x128xf32, #tpu.memory_space<vmem>>, vector<1x128xf32>
    %34 = vector.broadcast %33 : vector<1x128xf32> to vector<16x128xf32>
    %35 = arith.addf %32, %34 : vector<16x128xf32>
    %36 = tpu.iota {dimensions = array<i32: 1>} : vector<16x128xi32>
    %c8_i32 = arith.constant 8 : i32
    %37 = vector.broadcast %c8_i32 : i32 to vector<16x128xi32>
    %38 = arith.cmpi slt, %36, %37 : vector<16x128xi32>
    %cst_29 = arith.constant -1.000000e+30 : f32
    %39 = vector.broadcast %cst_29 : f32 to vector<16x128xf32>
    %40 = arith.select %38, %35, %39 : vector<16x128xi1>, vector<16x128xf32>
    %cst_30 = arith.constant dense<0xFF800000> : vector<16xf32>
    %41 = vector.multi_reduction <maximumf>, %40, %cst_30 [1] : vector<16x128xf32> to vector<16xf32>
    %42 = vector.shape_cast %41 : vector<16xf32> to vector<16x1xf32>
    %43 = vector.broadcast %42 : vector<16x1xf32> to vector<16x128xf32>
    %44 = arith.subf %40, %43 : vector<16x128xf32>
    %45 = math.exp %44 : vector<16x128xf32>
    %cst_31 = arith.constant dense<0.000000e+00> : vector<16xf32>
    %46 = vector.multi_reduction <add>, %45, %cst_31 [1] : vector<16x128xf32> to vector<16xf32>
    %47 = vector.shape_cast %46 : vector<16xf32> to vector<16x1xf32>
    %48 = math.log %47 : vector<16x1xf32>
    %49 = vector.broadcast %48 : vector<16x1xf32> to vector<16x128xf32>
    %50 = arith.subf %44, %49 : vector<16x128xf32>
    %c0_32 = arith.constant 0 : index
    %c0_33 = arith.constant 0 : index
    %51 = vector.load %arg11[%c0_32, %c0_33] : memref<16x128xf32, #tpu.memory_space<vmem>>, vector<16x128xf32>
    tpu.vector_store %arg11[%c0_32, %c0_33], %50 {strides = array<i32>} : memref<16x128xf32, #tpu.memory_space<vmem>>, vector<16x128xf32>,
    return
  }
}

</mosaic_0001>

<llo_original>
// kernel: pyg_model_forward.1
$region0: #{pyg_model_forward.1}
  #allocation0 [shape = 'u32[]', space=smem, size = 0x4, offset = 0x4, fixed_abs, tag = 'smem constant byte address 0x4 - core index']
  #allocation1 [shape = 'u32[72,128]{1,0:T(1,128)}', space=vmem, size = 0x9000, scoped, tag = 'internal scratch']
  %s0 = inlined_call_operand.vmem [shape: bf16[256,256], index: 0, kind: input, shape index: {}]
  %s1 = inlined_call_operand.vmem [shape: bf16[256,128], index: 1, kind: input, shape index: {}]
  %s2 = inlined_call_operand.vmem [shape: bf16[128,128], index: 2, kind: input, shape index: {}]
  %s3 = inlined_call_operand.vmem [shape: f32[1,128], index: 3, kind: input, shape index: {}]
  %s4 = inlined_call_operand.vmem [shape: bf16[128,128], index: 4, kind: input, shape index: {}]
  %s5 = inlined_call_operand.vmem [shape: f32[1,128], index: 5, kind: input, shape index: {}]
  %s6 = inlined_call_operand.vmem [shape: bf16[16,256], index: 6, kind: input, shape index: {}]
  %s7 = inlined_call_operand.vmem [shape: bf16[128,128], index: 7, kind: input, shape index: {}]
  %s8 = inlined_call_operand.vmem [shape: f32[1,128], index: 8, kind: input, shape index: {}]
  %s9 = inlined_call_operand.vmem [shape: bf16[128,128], index: 9, kind: input, shape index: {}]
  %s10 = inlined_call_operand.vmem [shape: f32[1,128], index: 10, kind: input, shape index: {}]
  %s11 = inlined_call_operand.hbm [shape: f32[16,128], index: 11, kind: output, shape index: {}]
  %s12 = sld [smem:[#allocation0]]
  $region54: #{pyg_model_forward.1} parent=0
    _
  %s14 = ssub.s32 1, %s12
  %s15 = scalar_select 0, %s14, %s12
  $region1: #{pyg_model_forward.1} parent=0
    #allocation2 [shape = 'u8[8192]{0}', space=vmem, size = 0x2000, scoped, tag = 'output window, operand 0, single buffered']
    #allocation3 [shape = 's32[1]{0}', space=sflag, size = 0x4, scoped, tag = 'scoped memory for pyg_model_forward.1']
    %16 = vsyncpa [#allocation3], 0
    // Predicated region
    $region2: #{pyg_model_forward.1} parent=1 // pred_check
      _
    $region3: #{pyg_model_forward.1} parent=1 // pred_check_branch
      %18 = sbr.rel (0) target = $region5
    $region4: #{pyg_model_forward.1} parent=1 // pred_region
      _
    $region5: #{pyg_model_forward.1} parent=1 // pred_fallthru
      _
    // Predicated region
    $region6: #{pyg_model_forward.1} parent=1 // pred_check
      _
    $region7: #{pyg_model_forward.1} parent=1 // pred_check_branch
      %20 = sbr.rel (0) target = $region9
    $region8: #{pyg_model_forward.1} parent=1 // pred_region
      _
    $region9: #{pyg_model_forward.1} parent=1 // pred_fallthru
      _
    // Predicated region
    $region10: #{pyg_model_forward.1} parent=1 // pred_check
      _
    $region11: #{pyg_model_forward.1} parent=1 // pred_check_branch
      %22 = sbr.rel (0) target = $region13
    $region12: #{pyg_model_forward.1} parent=1 // pred_region
      _
    $region13: #{pyg_model_forward.1} parent=1 // pred_fallthru
      _
    // Predicated region
    $region14: #{pyg_model_forward.1} parent=1 // pred_check
      _
    $region15: #{pyg_model_forward.1} parent=1 // pred_check_branch
      %24 = sbr.rel (0) target = $region17
    $region16: #{pyg_model_forward.1} parent=1 // pred_region
      _
    $region17: #{pyg_model_forward.1} parent=1 // pred_fallthru
      _
    // Predicated region
    $region18: #{pyg_model_forward.1} parent=1 // pred_check
      _
    $region19: #{pyg_model_forward.1} parent=1 // pred_check_branch
      %26 = sbr.rel (0) target = $region21
    $region20: #{pyg_model_forward.1} parent=1 // pred_region
      _
    $region21: #{pyg_model_forward.1} parent=1 // pred_fallthru
      _
    // Predicated region
    $region22: #{pyg_model_forward.1} parent=1 // pred_check
      _
    $region23: #{pyg_model_forward.1} parent=1 // pred_check_branch
      %28 = sbr.rel (0) target = $region25
    $region24: #{pyg_model_forward.1} parent=1 // pred_region
      _
    $region25: #{pyg_model_forward.1} parent=1 // pred_fallthru
      _
    // Predicated region
    $region26: #{pyg_model_forward.1} parent=1 // pred_check
      _
    $region27: #{pyg_model_forward.1} parent=1 // pred_check_branch
      %30 = sbr.rel (0) target = $region29
    $region28: #{pyg_model_forward.1} parent=1 // pred_region
      _
    $region29: #{pyg_model_forward.1} parent=1 // pred_fallthru
      _
    // Predicated region
    $region30: #{pyg_model_forward.1} parent=1 // pred_check
      _
    $region31: #{pyg_model_forward.1} parent=1 // pred_check_branch
      %32 = sbr.rel (0) target = $region33
    $region32: #{pyg_model_forward.1} parent=1 // pred_region
      _
    $region33: #{pyg_model_forward.1} parent=1 // pred_fallthru
      _
    // Predicated region
    $region34: #{pyg_model_forward.1} parent=1 // pred_check
      _
    $region35: #{pyg_model_forward.1} parent=1 // pred_check_branch
      %34 = sbr.rel (0) target = $region37
    $region36: #{pyg_model_forward.1} parent=1 // pred_region
      _
    $region37: #{pyg_model_forward.1} parent=1 // pred_fallthru
      _
    // Predicated region
    $region38: #{pyg_model_forward.1} parent=1 // pred_check
      _
    $region39: #{pyg_model_forward.1} parent=1 // pred_check_branch
      %36 = sbr.rel (0) target = $region41
    $region40: #{pyg_model_forward.1} parent=1 // pred_region
      _
    $region41: #{pyg_model_forward.1} parent=1 // pred_fallthru
      _
    // Predicated region
    $region42: #{pyg_model_forward.1} parent=1 // pred_check
      _
    $region43: #{pyg_model_forward.1} parent=1 // pred_check_branch
      %38 = sbr.rel (0) target = $region45
    $region44: #{pyg_model_forward.1} parent=1 // pred_region
      _
    $region45: #{pyg_model_forward.1} parent=1 // pred_fallthru
      _
    %v39 = vld [vmem:[%s0] sm:$0xff]
    %v40 = vld [vmem:[%s0 + $0x8] sm:$0xff]
    %v41 = vld [vmem:[%s0 + $0x10] sm:$0xff]
    %v42 = vld [vmem:[%s0 + $0x18] sm:$0xff]
    %v43 = vld [vmem:[%s0 + $0x20] sm:$0xff]
    %v44 = vld [vmem:[%s0 + $0x28] sm:$0xff]
    %v45 = vld [vmem:[%s0 + $0x30] sm:$0xff]
    %v46 = vld [vmem:[%s0 + $0x38] sm:$0xff]
    %v47 = vld [vmem:[%s0 + $0x40] sm:$0xff]
    %v48 = vld [vmem:[%s0 + $0x48] sm:$0xff]
    %v49 = vld [vmem:[%s0 + $0x50] sm:$0xff]
    %v50 = vld [vmem:[%s0 + $0x58] sm:$0xff]
    %v51 = vld [vmem:[%s0 + $0x60] sm:$0xff]
    %v52 = vld [vmem:[%s0 + $0x68] sm:$0xff]
    %v53 = vld [vmem:[%s0 + $0x70] sm:$0xff]
    %v54 = vld [vmem:[%s0 + $0x78] sm:$0xff]
    %v55 = vld [vmem:[%s0 + $0x80] sm:$0xff]
    %v56 = vld [vmem:[%s0 + $0x88] sm:$0xff]
    %v57 = vld [vmem:[%s0 + $0x90] sm:$0xff]
    %v58 = vld [vmem:[%s0 + $0x98] sm:$0xff]
    %v59 = vld [vmem:[%s0 + $0xa0] sm:$0xff]
    %v60 = vld [vmem:[%s0 + $0xa8] sm:$0xff]
    %v61 = vld [vmem:[%s0 + $0xb0] sm:$0xff]
    %v62 = vld [vmem:[%s0 + $0xb8] sm:$0xff]
    %v63 = vld [vmem:[%s0 + $0xc0] sm:$0xff]
    %v64 = vld [vmem:[%s0 + $0xc8] sm:$0xff]
    %v65 = vld [vmem:[%s0 + $0xd0] sm:$0xff]
    %v66 = vld [vmem:[%s0 + $0xd8] sm:$0xff]
    %v67 = vld [vmem:[%s0 + $0xe0] sm:$0xff]
    %v68 = vld [vmem:[%s0 + $0xe8] sm:$0xff]
    %v69 = vld [vmem:[%s0 + $0xf0] sm:$0xff]
    %v70 = vld [vmem:[%s0 + $0xf8] sm:$0xff]
    %v71 = vld [vmem:[%s1] sm:$0xf]
    %v72 = vld [vmem:[%s1 + $0x4] sm:$0xf]
    %v73 = vld [vmem:[%s1 + $0x8] sm:$0xf]
    %v74 = vld [vmem:[%s1 + $0xc] sm:$0xf]
    %v75 = vld [vmem:[%s1 + $0x10] sm:$0xf]
    %v76 = vld [vmem:[%s1 + $0x14] sm:$0xf]
    %v77 = vld [vmem:[%s1 + $0x18] sm:$0xf]
    %v78 = vld [vmem:[%s1 + $0x1c] sm:$0xf]
    %v79 = vld [vmem:[%s1 + $0x20] sm:$0xf]
    %v80 = vld [vmem:[%s1 + $0x24] sm:$0xf]
    %v81 = vld [vmem:[%s1 + $0x28] sm:$0xf]
    %v82 = vld [vmem:[%s1 + $0x2c] sm:$0xf]
    %v83 = vld [vmem:[%s1 + $0x30] sm:$0xf]
    %v84 = vld [vmem:[%s1 + $0x34] sm:$0xf]
    %v85 = vld [vmem:[%s1 + $0x38] sm:$0xf]
    %v86 = vld [vmem:[%s1 + $0x3c] sm:$0xf]
    %v87 = vld [vmem:[%s1 + $0x40] sm:$0xf]
    %v88 = vld [vmem:[%s1 + $0x44] sm:$0xf]
    %v89 = vld [vmem:[%s1 + $0x48] sm:$0xf]
    %v90 = vld [vmem:[%s1 + $0x4c] sm:$0xf]
    %v91 = vld [vmem:[%s1 + $0x50] sm:$0xf]
    %v92 = vld [vmem:[%s1 + $0x54] sm:$0xf]
    %v93 = vld [vmem:[%s1 + $0x58] sm:$0xf]
    %v94 = vld [vmem:[%s1 + $0x5c] sm:$0xf]
    %v95 = vld [vmem:[%s1 + $0x60] sm:$0xf]
    %v96 = vld [vmem:[%s1 + $0x64] sm:$0xf]
    %v97 = vld [vmem:[%s1 + $0x68] sm:$0xf]
    %v98 = vld [vmem:[%s1 + $0x6c] sm:$0xf]
    %v99 = vld [vmem:[%s1 + $0x70] sm:$0xf]
    %v100 = vld [vmem:[%s1 + $0x74] sm:$0xf]
    %v101 = vld [vmem:[%s1 + $0x78] sm:$0xf]
    %v102 = vld [vmem:[%s1 + $0x7c] sm:$0xf]
    %v103 = vld [vmem:[%s2] sm:$0xf]
    %v104 = vld [vmem:[%s2 + $0x4] sm:$0xf]
    %v105 = vld [vmem:[%s2 + $0x8] sm:$0xf]
    %v106 = vld [vmem:[%s2 + $0xc] sm:$0xf]
    %v107 = vld [vmem:[%s2 + $0x10] sm:$0xf]
    %v108 = vld [vmem:[%s2 + $0x14] sm:$0xf]
    %v109 = vld [vmem:[%s2 + $0x18] sm:$0xf]
    %v110 = vld [vmem:[%s2 + $0x1c] sm:$0xf]
    %v111 = vld [vmem:[%s2 + $0x20] sm:$0xf]
    %v112 = vld [vmem:[%s2 + $0x24] sm:$0xf]
    %v113 = vld [vmem:[%s2 + $0x28] sm:$0xf]
    %v114 = vld [vmem:[%s2 + $0x2c] sm:$0xf]
    %v115 = vld [vmem:[%s2 + $0x30] sm:$0xf]
    %v116 = vld [vmem:[%s2 + $0x34] sm:$0xf]
    %v117 = vld [vmem:[%s2 + $0x38] sm:$0xf]
    %v118 = vld [vmem:[%s2 + $0x3c] sm:$0xf]
    %v151 = vunpack.c.l.b16 %v71
    %v152 = vunpack.c.l.b16 %v72
    %v153 = vunpack.c.l.b16 %v73
    %v154 = vunpack.c.l.b16 %v74
    %v155 = vunpack.c.l.b16 %v75
    %v156 = vunpack.c.l.b16 %v76
    %v157 = vunpack.c.l.b16 %v77
    %v158 = vunpack.c.l.b16 %v78
    %v159 = vunpack.c.l.b16 %v79
    %v160 = vunpack.c.l.b16 %v80
    %v161 = vunpack.c.l.b16 %v81
    %v162 = vunpack.c.l.b16 %v82
    %v163 = vunpack.c.l.b16 %v83
    %v164 = vunpack.c.l.b16 %v84
    %v165 = vunpack.c.l.b16 %v85
    %v166 = vunpack.c.l.b16 %v86
    %v167 = vunpack.c.l.b16 %v87
    %v168 = vunpack.c.l.b16 %v88
    %v169 = vunpack.c.l.b16 %v89
    %v170 = vunpack.c.l.b16 %v90
    %v171 = vunpack.c.l.b16 %v91
    %v172 = vunpack.c.l.b16 %v92
    %v173 = vunpack.c.l.b16 %v93
    %v174 = vunpack.c.l.b16 %v94
    %v175 = vunpack.c.l.b16 %v95
    %v176 = vunpack.c.l.b16 %v96
    %v177 = vunpack.c.l.b16 %v97
    %v178 = vunpack.c.l.b16 %v98
    %v179 = vunpack.c.l.b16 %v99
    %v180 = vunpack.c.l.b16 %v100
    %v181 = vunpack.c.l.b16 %v101
    %v182 = vunpack.c.l.b16 %v102
    %v183 = vpack.c.b16 %v152, %v151
    %v184 = vpack.c.b16 %v154, %v153
    %v185 = vpack.c.b16 %v156, %v155
    %v186 = vpack.c.b16 %v158, %v157
    %v187 = vpack.c.b16 %v160, %v159
    %v188 = vpack.c.b16 %v162, %v161
    %v189 = vpack.c.b16 %v164, %v163
    %v190 = vpack.c.b16 %v166, %v165
    %v191 = vpack.c.b16 %v168, %v167
    %v192 = vpack.c.b16 %v170, %v169
    %v193 = vpack.c.b16 %v172, %v171
    %v194 = vpack.c.b16 %v174, %v173
    %v195 = vpack.c.b16 %v176, %v175
    %v196 = vpack.c.b16 %v178, %v177
    %v197 = vpack.c.b16 %v180, %v179
    %v198 = vpack.c.b16 %v182, %v181
    %v231 = vunpack.c.l.b16 %v103
    %v232 = vunpack.c.l.b16 %v104
    %v233 = vunpack.c.l.b16 %v105
    %v234 = vunpack.c.l.b16 %v106
    %v235 = vunpack.c.l.b16 %v107
    %v236 = vunpack.c.l.b16 %v108
    %v237 = vunpack.c.l.b16 %v109
    %v238 = vunpack.c.l.b16 %v110
    %v239 = vunpack.c.l.b16 %v111
    %v240 = vunpack.c.l.b16 %v112
    %v241 = vunpack.c.l.b16 %v113
    %v242 = vunpack.c.l.b16 %v114
    %v243 = vunpack.c.l.b16 %v115
    %v244 = vunpack.c.l.b16 %v116
    %v245 = vunpack.c.l.b16 %v117
    %v246 = vunpack.c.l.b16 %v118
    %v247 = vpack.c.b16 %v232, %v231
    %v248 = vpack.c.b16 %v234, %v233
    %v249 = vpack.c.b16 %v236, %v235
    %v250 = vpack.c.b16 %v238, %v237
    %v251 = vpack.c.b16 %v240, %v239
    %v252 = vpack.c.b16 %v242, %v241
    %v253 = vpack.c.b16 %v244, %v243
    %v254 = vpack.c.b16 %v246, %v245
    %263 = vmatpush.bf16.msra.mxu0 %v254
    %264 = vmatpush.bf16.msra.mxu0 %v253
    %265 = vmatpush.bf16.msra.mxu0 %v252
    %266 = vmatpush.bf16.msra.mxu0 %v251
    %267 = vmatpush.bf16.msra.mxu0 %v250
    %268 = vmatpush.bf16.msra.mxu0 %v249
    %269 = vmatpush.bf16.msra.mxu0 %v248
    %270 = vmatpush.bf16.msra.mxu0 %v247
    %271 = vmatmul.bf16.gmra.mxu0 %v183
    %v272 = vpop.f32.mrf.mxu0
    %v273 = vadd.f32 0.0, %v272
    %v274 = vpop.f32.mrf.mxu0
    %v275 = vadd.f32 0.0, %v274
    %276 = vmatmul.bf16.gmra.mxu0 %v184
    %v277 = vpop.f32.mrf.mxu0
    %v278 = vadd.f32 0.0, %v277
    %v279 = vpop.f32.mrf.mxu0
    %v280 = vadd.f32 0.0, %v279
    %281 = vmatmul.bf16.gmra.mxu0 %v185
    %v282 = vpop.f32.mrf.mxu0
    %v283 = vadd.f32 0.0, %v282
    %v284 = vpop.f32.mrf.mxu0
    %v285 = vadd.f32 0.0, %v284
    %286 = vmatmul.bf16.gmra.mxu0 %v186
    %v287 = vpop.f32.mrf.mxu0
    %v288 = vadd.f32 0.0, %v287
    %v289 = vpop.f32.mrf.mxu0
    %v290 = vadd.f32 0.0, %v289
    %291 = vmatmul.bf16.gmra.mxu0 %v187
    %v292 = vpop.f32.mrf.mxu0
    %v293 = vadd.f32 0.0, %v292
    %v294 = vpop.f32.mrf.mxu0
    %v295 = vadd.f32 0.0, %v294
    %296 = vmatmul.bf16.gmra.mxu0 %v188
    %v297 = vpop.f32.mrf.mxu0
    %v298 = vadd.f32 0.0, %v297
    %v299 = vpop.f32.mrf.mxu0
    %v300 = vadd.f32 0.0, %v299
    %301 = vmatmul.bf16.gmra.mxu0 %v189
    %v302 = vpop.f32.mrf.mxu0
    %v303 = vadd.f32 0.0, %v302
    %v304 = vpop.f32.mrf.mxu0
    %v305 = vadd.f32 0.0, %v304
    %306 = vmatmul.bf16.gmra.mxu0 %v190
    %v307 = vpop.f32.mrf.mxu0
    %v308 = vadd.f32 0.0, %v307
    %v309 = vpop.f32.mrf.mxu0
    %v310 = vadd.f32 0.0, %v309
    %311 = vmatmul.bf16.gmra.mxu0 %v191
    %v312 = vpop.f32.mrf.mxu0
    %v313 = vadd.f32 0.0, %v312
    %v314 = vpop.f32.mrf.mxu0
    %v315 = vadd.f32 0.0, %v314
    %316 = vmatmul.bf16.gmra.mxu0 %v192
    %v317 = vpop.f32.mrf.mxu0
    %v318 = vadd.f32 0.0, %v317
    %v319 = vpop.f32.mrf.mxu0
    %v320 = vadd.f32 0.0, %v319
    %321 = vmatmul.bf16.gmra.mxu0 %v193
    %v322 = vpop.f32.mrf.mxu0
    %v323 = vadd.f32 0.0, %v322
    %v324 = vpop.f32.mrf.mxu0
    %v325 = vadd.f32 0.0, %v324
    %326 = vmatmul.bf16.gmra.mxu0 %v194
    %v327 = vpop.f32.mrf.mxu0
    %v328 = vadd.f32 0.0, %v327
    %v329 = vpop.f32.mrf.mxu0
    %v330 = vadd.f32 0.0, %v329
    %331 = vmatmul.bf16.gmra.mxu0 %v195
    %v332 = vpop.f32.mrf.mxu0
    %v333 = vadd.f32 0.0, %v332
    %v334 = vpop.f32.mrf.mxu0
    %v335 = vadd.f32 0.0, %v334
    %336 = vmatmul.bf16.gmra.mxu0 %v196
    %v337 = vpop.f32.mrf.mxu0
    %v338 = vadd.f32 0.0, %v337
    %v339 = vpop.f32.mrf.mxu0
    %v340 = vadd.f32 0.0, %v339
    %341 = vmatmul.bf16.gmra.mxu0 %v197
    %v342 = vpop.f32.mrf.mxu0
    %v343 = vadd.f32 0.0, %v342
    %v344 = vpop.f32.mrf.mxu0
    %v345 = vadd.f32 0.0, %v344
    %346 = vmatmul.bf16.gmra.mxu0 %v198
    %v347 = vpop.f32.mrf.mxu0
    %v348 = vadd.f32 0.0, %v347
    %v349 = vpop.f32.mrf.mxu0
    %v350 = vadd.f32 0.0, %v349
    %351 = vdwg.mxu0
    %v352 = vpack.c.bf16 %v275, %v273
    %v353 = vpack.c.bf16 %v280, %v278
    %v354 = vpack.c.bf16 %v285, %v283
    %v355 = vpack.c.bf16 %v290, %v288
    %v356 = vpack.c.bf16 %v295, %v293
    %v357 = vpack.c.bf16 %v300, %v298
    %v358 = vpack.c.bf16 %v305, %v303
    %v359 = vpack.c.bf16 %v310, %v308
    %v360 = vpack.c.bf16 %v315, %v313
    %v361 = vpack.c.bf16 %v320, %v318
    %v362 = vpack.c.bf16 %v325, %v323
    %v363 = vpack.c.bf16 %v330, %v328
    %v364 = vpack.c.bf16 %v335, %v333
    %v365 = vpack.c.bf16 %v340, %v338
    %v366 = vpack.c.bf16 %v345, %v343
    %v367 = vpack.c.bf16 %v350, %v348
    %v368 = vld [vmem:[%s3] sm:$0x1]
    %v370 = vperm.slane %v368, 0
    %v404 = vunpack.c.l.b16 %v39
    %v405 = vunpack.c.h.b16 %v39
    %v406 = vunpack.c.l.b16 %v40
    %v407 = vunpack.c.h.b16 %v40
    %v408 = vunpack.c.l.b16 %v41
    %v409 = vunpack.c.h.b16 %v41
    %v410 = vunpack.c.l.b16 %v42
    %v411 = vunpack.c.h.b16 %v42
    %v412 = vunpack.c.l.b16 %v43
    %v413 = vunpack.c.h.b16 %v43
    %v414 = vunpack.c.l.b16 %v44
    %v415 = vunpack.c.h.b16 %v44
    %v416 = vunpack.c.l.b16 %v45
    %v417 = vunpack.c.h.b16 %v45
    %v418 = vunpack.c.l.b16 %v46
    %v419 = vunpack.c.h.b16 %v46
    %v420 = vunpack.c.l.b16 %v47
    %v421 = vunpack.c.h.b16 %v47
    %v422 = vunpack.c.l.b16 %v48
    %v423 = vunpack.c.h.b16 %v48
    %v424 = vunpack.c.l.b16 %v49
    %v425 = vunpack.c.h.b16 %v49
    %v426 = vunpack.c.l.b16 %v50
    %v427 = vunpack.c.h.b16 %v50
    %v428 = vunpack.c.l.b16 %v51
    %v429 = vunpack.c.h.b16 %v51
    %v430 = vunpack.c.l.b16 %v52
    %v431 = vunpack.c.h.b16 %v52
    %v432 = vunpack.c.l.b16 %v53
    %v433 = vunpack.c.h.b16 %v53
    %v434 = vunpack.c.l.b16 %v54
    %v435 = vunpack.c.h.b16 %v54
    %v436 = vunpack.c.l.b16 %v55
    %v437 = vunpack.c.h.b16 %v55
    %v438 = vunpack.c.l.b16 %v56
    %v439 = vunpack.c.h.b16 %v56
    %v440 = vunpack.c.l.b16 %v57
    %v441 = vunpack.c.h.b16 %v57
    %v442 = vunpack.c.l.b16 %v58
    %v443 = vunpack.c.h.b16 %v58
    %v444 = vunpack.c.l.b16 %v59
    %v445 = vunpack.c.h.b16 %v59
    %v446 = vunpack.c.l.b16 %v60
    %v447 = vunpack.c.h.b16 %v60
    %v448 = vunpack.c.l.b16 %v61
    %v449 = vunpack.c.h.b16 %v61
    %v450 = vunpack.c.l.b16 %v62
    %v451 = vunpack.c.h.b16 %v62
    %v452 = vunpack.c.l.b16 %v63
    %v453 = vunpack.c.h.b16 %v63
    %v454 = vunpack.c.l.b16 %v64
    %v455 = vunpack.c.h.b16 %v64
    %v456 = vunpack.c.l.b16 %v65
    %v457 = vunpack.c.h.b16 %v65
    %v458 = vunpack.c.l.b16 %v66
    %v459 = vunpack.c.h.b16 %v66
    %v460 = vunpack.c.l.b16 %v67
    %v461 = vunpack.c.h.b16 %v67
    %v462 = vunpack.c.l.b16 %v68
    %v463 = vunpack.c.h.b16 %v68
    %v464 = vunpack.c.l.b16 %v69
    %v465 = vunpack.c.h.b16 %v69
    %v466 = vunpack.c.l.b16 %v70
    %v467 = vunpack.c.h.b16 %v70
    %v468 = vpack.c.b16 %v406, %v404
    %v469 = vpack.c.b16 %v407, %v405
    %v470 = vpack.c.b16 %v410, %v408
    %v471 = vpack.c.b16 %v411, %v409
    %v472 = vpack.c.b16 %v414, %v412
    %v473 = vpack.c.b16 %v415, %v413
    %v474 = vpack.c.b16 %v418, %v416
    %v475 = vpack.c.b16 %v419, %v417
    %v476 = vpack.c.b16 %v422, %v420
    %v477 = vpack.c.b16 %v423, %v421
    %v478 = vpack.c.b16 %v426, %v424
    %v479 = vpack.c.b16 %v427, %v425
    %v480 = vpack.c.b16 %v430, %v428
    %v481 = vpack.c.b16 %v431, %v429
    %v482 = vpack.c.b16 %v434, %v432
    %v483 = vpack.c.b16 %v435, %v433
    %v484 = vpack.c.b16 %v438, %v436
    %v485 = vpack.c.b16 %v439, %v437
    %v486 = vpack.c.b16 %v442, %v440
    %v487 = vpack.c.b16 %v443, %v441
    %v488 = vpack.c.b16 %v446, %v444
    %v489 = vpack.c.b16 %v447, %v445
    %v490 = vpack.c.b16 %v450, %v448
    %v491 = vpack.c.b16 %v451, %v449
    %v492 = vpack.c.b16 %v454, %v452
    %v493 = vpack.c.b16 %v455, %v453
    %v494 = vpack.c.b16 %v458, %v456
    %v495 = vpack.c.b16 %v459, %v457
    %v496 = vpack.c.b16 %v462, %v460
    %v497 = vpack.c.b16 %v463, %v461
    %v498 = vpack.c.b16 %v466, %v464
    %v499 = vpack.c.b16 %v467, %v465
    %532 = vmatpush.bf16.msra.mxu0 %v359
    %533 = vmatpush.bf16.msra.mxu0 %v358
    %534 = vmatpush.bf16.msra.mxu0 %v357
    %535 = vmatpush.bf16.msra.mxu0 %v356
    %536 = vmatpush.bf16.msra.mxu0 %v355
    %537 = vmatpush.bf16.msra.mxu0 %v354
    %538 = vmatpush.bf16.msra.mxu0 %v353
    %539 = vmatpush.bf16.msra.mxu0 %v352
    %540 = vmatmul.bf16.gmra.mxu0 %v468
    %v541 = vpop.f32.mrf.mxu0
    %v542 = vadd.f32 %v370, %v541
    %v543 = vpop.f32.mrf.mxu0
    %v544 = vadd.f32 %v370, %v543
    %545 = vmatmul.bf16.gmra.mxu0 %v470
    %v546 = vpop.f32.mrf.mxu0
    %v547 = vadd.f32 %v370, %v546
    %v548 = vpop.f32.mrf.mxu0
    %v549 = vadd.f32 %v370, %v548
    %550 = vmatmul.bf16.gmra.mxu0 %v472
    %v551 = vpop.f32.mrf.mxu0
    %v552 = vadd.f32 %v370, %v551
    %v553 = vpop.f32.mrf.mxu0
    %v554 = vadd.f32 %v370, %v553
    %555 = vmatmul.bf16.gmra.mxu0 %v474
    %v556 = vpop.f32.mrf.mxu0
    %v557 = vadd.f32 %v370, %v556
    %v558 = vpop.f32.mrf.mxu0
    %v559 = vadd.f32 %v370, %v558
    %560 = vmatmul.bf16.gmra.mxu0 %v476
    %v561 = vpop.f32.mrf.mxu0
    %v562 = vadd.f32 %v370, %v561
    %v563 = vpop.f32.mrf.mxu0
    %v564 = vadd.f32 %v370, %v563
    %565 = vmatmul.bf16.gmra.mxu0 %v478
    %v566 = vpop.f32.mrf.mxu0
    %v567 = vadd.f32 %v370, %v566
    %v568 = vpop.f32.mrf.mxu0
    %v569 = vadd.f32 %v370, %v568
    %570 = vmatmul.bf16.gmra.mxu0 %v480
    %v571 = vpop.f32.mrf.mxu0
    %v572 = vadd.f32 %v370, %v571
    %v573 = vpop.f32.mrf.mxu0
    %v574 = vadd.f32 %v370, %v573
    %575 = vmatmul.bf16.gmra.mxu0 %v482
    %v576 = vpop.f32.mrf.mxu0
    %v577 = vadd.f32 %v370, %v576
    %v578 = vpop.f32.mrf.mxu0
    %v579 = vadd.f32 %v370, %v578
    %580 = vmatmul.bf16.gmra.mxu0 %v484
    %v581 = vpop.f32.mrf.mxu0
    %v582 = vadd.f32 %v370, %v581
    %v583 = vpop.f32.mrf.mxu0
    %v584 = vadd.f32 %v370, %v583
    %585 = vmatmul.bf16.gmra.mxu0 %v486
    %v586 = vpop.f32.mrf.mxu0
    %v587 = vadd.f32 %v370, %v586
    %v588 = vpop.f32.mrf.mxu0
    %v589 = vadd.f32 %v370, %v588
    %590 = vmatmul.bf16.gmra.mxu0 %v488
    %v591 = vpop.f32.mrf.mxu0
    %v592 = vadd.f32 %v370, %v591
    %v593 = vpop.f32.mrf.mxu0
    %v594 = vadd.f32 %v370, %v593
    %595 = vmatmul.bf16.gmra.mxu0 %v490
    %v596 = vpop.f32.mrf.mxu0
    %v597 = vadd.f32 %v370, %v596
    %v598 = vpop.f32.mrf.mxu0
    %v599 = vadd.f32 %v370, %v598
    %600 = vmatmul.bf16.gmra.mxu0 %v492
    %v601 = vpop.f32.mrf.mxu0
    %v602 = vadd.f32 %v370, %v601
    %v603 = vpop.f32.mrf.mxu0
    %v604 = vadd.f32 %v370, %v603
    %605 = vmatmul.bf16.gmra.mxu0 %v494
    %v606 = vpop.f32.mrf.mxu0
    %v607 = vadd.f32 %v370, %v606
    %v608 = vpop.f32.mrf.mxu0
    %v609 = vadd.f32 %v370, %v608
    %610 = vmatmul.bf16.gmra.mxu0 %v496
    %v611 = vpop.f32.mrf.mxu0
    %v612 = vadd.f32 %v370, %v611
    %v613 = vpop.f32.mrf.mxu0
    %v614 = vadd.f32 %v370, %v613
    %615 = vmatmul.bf16.gmra.mxu0 %v498
    %v616 = vpop.f32.mrf.mxu0
    %v617 = vadd.f32 %v370, %v616
    %v618 = vpop.f32.mrf.mxu0
    %v619 = vadd.f32 %v370, %v618
    %620 = vdwg.mxu0
    %621 = vmatpush.bf16.msra.mxu0 %v367
    %622 = vmatpush.bf16.msra.mxu0 %v366
    %623 = vmatpush.bf16.msra.mxu0 %v365
    %624 = vmatpush.bf16.msra.mxu0 %v364
    %625 = vmatpush.bf16.msra.mxu0 %v363
    %626 = vmatpush.bf16.msra.mxu0 %v362
    %627 = vmatpush.bf16.msra.mxu0 %v361
    %628 = vmatpush.bf16.msra.mxu0 %v360
    %629 = vmatmul.bf16.gmra.mxu0 %v469
    %v630 = vpop.f32.mrf.mxu0
    %v631 = vadd.f32 %v542, %v630
    %v632 = vpop.f32.mrf.mxu0
    %v633 = vadd.f32 %v544, %v632
    %634 = vmatmul.bf16.gmra.mxu0 %v471
    %v635 = vpop.f32.mrf.mxu0
    %v636 = vadd.f32 %v547, %v635
    %v637 = vpop.f32.mrf.mxu0
    %v638 = vadd.f32 %v549, %v637
    %639 = vmatmul.bf16.gmra.mxu0 %v473
    %v640 = vpop.f32.mrf.mxu0
    %v641 = vadd.f32 %v552, %v640
    %v642 = vpop.f32.mrf.mxu0
    %v643 = vadd.f32 %v554, %v642
    %644 = vmatmul.bf16.gmra.mxu0 %v475
    %v645 = vpop.f32.mrf.mxu0
    %v646 = vadd.f32 %v557, %v645
    %v647 = vpop.f32.mrf.mxu0
    %v648 = vadd.f32 %v559, %v647
    %649 = vmatmul.bf16.gmra.mxu0 %v477
    %v650 = vpop.f32.mrf.mxu0
    %v651 = vadd.f32 %v562, %v650
    %v652 = vpop.f32.mrf.mxu0
    %v653 = vadd.f32 %v564, %v652
    %654 = vmatmul.bf16.gmra.mxu0 %v479
    %v655 = vpop.f32.mrf.mxu0
    %v656 = vadd.f32 %v567, %v655
    %v657 = vpop.f32.mrf.mxu0
    %v658 = vadd.f32 %v569, %v657
    %659 = vmatmul.bf16.gmra.mxu0 %v481
    %v660 = vpop.f32.mrf.mxu0
    %v661 = vadd.f32 %v572, %v660
    %v662 = vpop.f32.mrf.mxu0
    %v663 = vadd.f32 %v574, %v662
    %664 = vmatmul.bf16.gmra.mxu0 %v483
    %v665 = vpop.f32.mrf.mxu0
    %v666 = vadd.f32 %v577, %v665
    %v667 = vpop.f32.mrf.mxu0
    %v668 = vadd.f32 %v579, %v667
    %669 = vmatmul.bf16.gmra.mxu0 %v485
    %v670 = vpop.f32.mrf.mxu0
    %v671 = vadd.f32 %v582, %v670
    %v672 = vpop.f32.mrf.mxu0
    %v673 = vadd.f32 %v584, %v672
    %674 = vmatmul.bf16.gmra.mxu0 %v487
    %v675 = vpop.f32.mrf.mxu0
    %v676 = vadd.f32 %v587, %v675
    %v677 = vpop.f32.mrf.mxu0
    %v678 = vadd.f32 %v589, %v677
    %679 = vmatmul.bf16.gmra.mxu0 %v489
    %v680 = vpop.f32.mrf.mxu0
    %v681 = vadd.f32 %v592, %v680
    %v682 = vpop.f32.mrf.mxu0
    %v683 = vadd.f32 %v594, %v682
    %684 = vmatmul.bf16.gmra.mxu0 %v491
    %v685 = vpop.f32.mrf.mxu0
    %v686 = vadd.f32 %v597, %v685
    %v687 = vpop.f32.mrf.mxu0
    %v688 = vadd.f32 %v599, %v687
    %689 = vmatmul.bf16.gmra.mxu0 %v493
    %v690 = vpop.f32.mrf.mxu0
    %v691 = vadd.f32 %v602, %v690
    %v692 = vpop.f32.mrf.mxu0
    %v693 = vadd.f32 %v604, %v692
    %694 = vmatmul.bf16.gmra.mxu0 %v495
    %v695 = vpop.f32.mrf.mxu0
    %v696 = vadd.f32 %v607, %v695
    %v697 = vpop.f32.mrf.mxu0
    %v698 = vadd.f32 %v609, %v697
    %699 = vmatmul.bf16.gmra.mxu0 %v497
    %v700 = vpop.f32.mrf.mxu0
    %v701 = vadd.f32 %v612, %v700
    %v702 = vpop.f32.mrf.mxu0
    %v703 = vadd.f32 %v614, %v702
    %704 = vmatmul.bf16.gmra.mxu0 %v499
    %v705 = vpop.f32.mrf.mxu0
    %v706 = vadd.f32 %v617, %v705
    %v707 = vpop.f32.mrf.mxu0
    %v708 = vadd.f32 %v619, %v707
    %709 = vdwg.mxu0
    %v710 = vmax.f32 %v631, 0.0
    %v711 = vmax.f32 %v633, 0.0
    %v712 = vmax.f32 %v636, 0.0
    %v713 = vmax.f32 %v638, 0.0
    %v714 = vmax.f32 %v641, 0.0
    %v715 = vmax.f32 %v643, 0.0
    %v716 = vmax.f32 %v646, 0.0
    %v717 = vmax.f32 %v648, 0.0
    %v718 = vmax.f32 %v651, 0.0
    %v719 = vmax.f32 %v653, 0.0
    %v720 = vmax.f32 %v656, 0.0
    %v721 = vmax.f32 %v658, 0.0
    %v722 = vmax.f32 %v661, 0.0
    %v723 = vmax.f32 %v663, 0.0
    %v724 = vmax.f32 %v666, 0.0
    %v725 = vmax.f32 %v668, 0.0
    %v726 = vmax.f32 %v671, 0.0
    %v727 = vmax.f32 %v673, 0.0
    %v728 = vmax.f32 %v676, 0.0
    %v729 = vmax.f32 %v678, 0.0
    %v730 = vmax.f32 %v681, 0.0
    %v731 = vmax.f32 %v683, 0.0
    %v732 = vmax.f32 %v686, 0.0
    %v733 = vmax.f32 %v688, 0.0
    %v734 = vmax.f32 %v691, 0.0
    %v735 = vmax.f32 %v693, 0.0
    %v736 = vmax.f32 %v696, 0.0
    %v737 = vmax.f32 %v698, 0.0
    %v738 = vmax.f32 %v701, 0.0
    %v739 = vmax.f32 %v703, 0.0
    %v740 = vmax.f32 %v706, 0.0
    %v741 = vmax.f32 %v708, 0.0
    %v742 = vpack.c.bf16 %v711, %v710
    %v743 = vpack.c.bf16 %v713, %v712
    %v744 = vpack.c.bf16 %v715, %v714
    %v745 = vpack.c.bf16 %v717, %v716
    %v746 = vpack.c.bf16 %v719, %v718
    %v747 = vpack.c.bf16 %v721, %v720
    %v748 = vpack.c.bf16 %v723, %v722
    %v749 = vpack.c.bf16 %v725, %v724
    %v750 = vpack.c.bf16 %v727, %v726
    %v751 = vpack.c.bf16 %v729, %v728
    %v752 = vpack.c.bf16 %v731, %v730
    %v753 = vpack.c.bf16 %v733, %v732
    %v754 = vpack.c.bf16 %v735, %v734
    %v755 = vpack.c.bf16 %v737, %v736
    %v756 = vpack.c.bf16 %v739, %v738
    %v757 = vpack.c.bf16 %v741, %v740
    %758 = vmatpush.bf16.msra.mxu0 %v749
    %759 = vmatpush.bf16.msra.mxu0 %v748
    %760 = vmatpush.bf16.msra.mxu0 %v747
    %761 = vmatpush.bf16.msra.mxu0 %v746
    %762 = vmatpush.bf16.msra.mxu0 %v745
    %763 = vmatpush.bf16.msra.mxu0 %v744
    %764 = vmatpush.bf16.msra.mxu0 %v743
    %765 = vmatpush.bf16.msra.mxu0 %v742
    %766 = vmatmul.bf16.gmra.mxu0 %v468
    %v767 = vpop.f32.mrf.mxu0
    %v768 = vadd.f32 0.0, %v767
    %v769 = vpop.f32.mrf.mxu0
    %v770 = vadd.f32 0.0, %v769
    %771 = vmatmul.bf16.gmra.mxu0 %v470
    %v772 = vpop.f32.mrf.mxu0
    %v773 = vadd.f32 0.0, %v772
    %v774 = vpop.f32.mrf.mxu0
    %v775 = vadd.f32 0.0, %v774
    %776 = vmatmul.bf16.gmra.mxu0 %v472
    %v777 = vpop.f32.mrf.mxu0
    %v778 = vadd.f32 0.0, %v777
    %v779 = vpop.f32.mrf.mxu0
    %v780 = vadd.f32 0.0, %v779
    %781 = vmatmul.bf16.gmra.mxu0 %v474
    %v782 = vpop.f32.mrf.mxu0
    %v783 = vadd.f32 0.0, %v782
    %v784 = vpop.f32.mrf.mxu0
    %v785 = vadd.f32 0.0, %v784
    %786 = vmatmul.bf16.gmra.mxu0 %v476
    %v787 = vpop.f32.mrf.mxu0
    %v788 = vadd.f32 0.0, %v787
    %v789 = vpop.f32.mrf.mxu0
    %v790 = vadd.f32 0.0, %v789
    %791 = vmatmul.bf16.gmra.mxu0 %v478
    %v792 = vpop.f32.mrf.mxu0
    %v793 = vadd.f32 0.0, %v792
    %v794 = vpop.f32.mrf.mxu0
    %v795 = vadd.f32 0.0, %v794
    %796 = vmatmul.bf16.gmra.mxu0 %v480
    %v797 = vpop.f32.mrf.mxu0
    %v798 = vadd.f32 0.0, %v797
    %v799 = vpop.f32.mrf.mxu0
    %v800 = vadd.f32 0.0, %v799
    %801 = vmatmul.bf16.gmra.mxu0 %v482
    %v802 = vpop.f32.mrf.mxu0
    %v803 = vadd.f32 0.0, %v802
    %v804 = vpop.f32.mrf.mxu0
    %v805 = vadd.f32 0.0, %v804
    %806 = vmatmul.bf16.gmra.mxu0 %v484
    %v807 = vpop.f32.mrf.mxu0
    %v808 = vadd.f32 0.0, %v807
    %v809 = vpop.f32.mrf.mxu0
    %v810 = vadd.f32 0.0, %v809
    %811 = vmatmul.bf16.gmra.mxu0 %v486
    %v812 = vpop.f32.mrf.mxu0
    %v813 = vadd.f32 0.0, %v812
    %v814 = vpop.f32.mrf.mxu0
    %v815 = vadd.f32 0.0, %v814
    %816 = vmatmul.bf16.gmra.mxu0 %v488
    %v817 = vpop.f32.mrf.mxu0
    %v818 = vadd.f32 0.0, %v817
    %v819 = vpop.f32.mrf.mxu0
    %v820 = vadd.f32 0.0, %v819
    %821 = vmatmul.bf16.gmra.mxu0 %v490
    %v822 = vpop.f32.mrf.mxu0
    %v823 = vadd.f32 0.0, %v822
    %v824 = vpop.f32.mrf.mxu0
    %v825 = vadd.f32 0.0, %v824
    %826 = vmatmul.bf16.gmra.mxu0 %v492
    %v827 = vpop.f32.mrf.mxu0
    %v828 = vadd.f32 0.0, %v827
    %v829 = vpop.f32.mrf.mxu0
    %v830 = vadd.f32 0.0, %v829
    %831 = vmatmul.bf16.gmra.mxu0 %v494
    %v832 = vpop.f32.mrf.mxu0
    %v833 = vadd.f32 0.0, %v832
    %v834 = vpop.f32.mrf.mxu0
    %v835 = vadd.f32 0.0, %v834
    %836 = vmatmul.bf16.gmra.mxu0 %v496
    %v837 = vpop.f32.mrf.mxu0
    %v838 = vadd.f32 0.0, %v837
    %v839 = vpop.f32.mrf.mxu0
    %v840 = vadd.f32 0.0, %v839
    %841 = vmatmul.bf16.gmra.mxu0 %v498
    %v842 = vpop.f32.mrf.mxu0
    %v843 = vadd.f32 0.0, %v842
    %v844 = vpop.f32.mrf.mxu0
    %v845 = vadd.f32 0.0, %v844
    %846 = vdwg.mxu0
    %847 = vmatpush.bf16.msra.mxu0 %v757
    %848 = vmatpush.bf16.msra.mxu0 %v756
    %849 = vmatpush.bf16.msra.mxu0 %v755
    %850 = vmatpush.bf16.msra.mxu0 %v754
    %851 = vmatpush.bf16.msra.mxu0 %v753
    %852 = vmatpush.bf16.msra.mxu0 %v752
    %853 = vmatpush.bf16.msra.mxu0 %v751
    %854 = vmatpush.bf16.msra.mxu0 %v750
    %855 = vmatmul.bf16.gmra.mxu0 %v469
    %v856 = vpop.f32.mrf.mxu0
    %v857 = vadd.f32 %v768, %v856
    %v858 = vpop.f32.mrf.mxu0
    %v859 = vadd.f32 %v770, %v858
    %860 = vmatmul.bf16.gmra.mxu0 %v471
    %v861 = vpop.f32.mrf.mxu0
    %v862 = vadd.f32 %v773, %v861
    %v863 = vpop.f32.mrf.mxu0
    %v864 = vadd.f32 %v775, %v863
    %865 = vmatmul.bf16.gmra.mxu0 %v473
    %v866 = vpop.f32.mrf.mxu0
    %v867 = vadd.f32 %v778, %v866
    %v868 = vpop.f32.mrf.mxu0
    %v869 = vadd.f32 %v780, %v868
    %870 = vmatmul.bf16.gmra.mxu0 %v475
    %v871 = vpop.f32.mrf.mxu0
    %v872 = vadd.f32 %v783, %v871
    %v873 = vpop.f32.mrf.mxu0
    %v874 = vadd.f32 %v785, %v873
    %875 = vmatmul.bf16.gmra.mxu0 %v477
    %v876 = vpop.f32.mrf.mxu0
    %v877 = vadd.f32 %v788, %v876
    %v878 = vpop.f32.mrf.mxu0
    %v879 = vadd.f32 %v790, %v878
    %880 = vmatmul.bf16.gmra.mxu0 %v479
    %v881 = vpop.f32.mrf.mxu0
    %v882 = vadd.f32 %v793, %v881
    %v883 = vpop.f32.mrf.mxu0
    %v884 = vadd.f32 %v795, %v883
    %885 = vmatmul.bf16.gmra.mxu0 %v481
    %v886 = vpop.f32.mrf.mxu0
    %v887 = vadd.f32 %v798, %v886
    %v888 = vpop.f32.mrf.mxu0
    %v889 = vadd.f32 %v800, %v888
    %890 = vmatmul.bf16.gmra.mxu0 %v483
    %v891 = vpop.f32.mrf.mxu0
    %v892 = vadd.f32 %v803, %v891
    %v893 = vpop.f32.mrf.mxu0
    %v894 = vadd.f32 %v805, %v893
    %895 = vmatmul.bf16.gmra.mxu0 %v485
    %v896 = vpop.f32.mrf.mxu0
    %v897 = vadd.f32 %v808, %v896
    %v898 = vpop.f32.mrf.mxu0
    %v899 = vadd.f32 %v810, %v898
    %900 = vmatmul.bf16.gmra.mxu0 %v487
    %v901 = vpop.f32.mrf.mxu0
    %v902 = vadd.f32 %v813, %v901
    %v903 = vpop.f32.mrf.mxu0
    %v904 = vadd.f32 %v815, %v903
    %905 = vmatmul.bf16.gmra.mxu0 %v489
    %v906 = vpop.f32.mrf.mxu0
    %v907 = vadd.f32 %v818, %v906
    %v908 = vpop.f32.mrf.mxu0
    %v909 = vadd.f32 %v820, %v908
    %910 = vmatmul.bf16.gmra.mxu0 %v491
    %v911 = vpop.f32.mrf.mxu0
    %v912 = vadd.f32 %v823, %v911
    %v913 = vpop.f32.mrf.mxu0
    %v914 = vadd.f32 %v825, %v913
    %915 = vmatmul.bf16.gmra.mxu0 %v493
    %v916 = vpop.f32.mrf.mxu0
    %v917 = vadd.f32 %v828, %v916
    %v918 = vpop.f32.mrf.mxu0
    %v919 = vadd.f32 %v830, %v918
    %920 = vmatmul.bf16.gmra.mxu0 %v495
    %v921 = vpop.f32.mrf.mxu0
    %v922 = vadd.f32 %v833, %v921
    %v923 = vpop.f32.mrf.mxu0
    %v924 = vadd.f32 %v835, %v923
    %925 = vmatmul.bf16.gmra.mxu0 %v497
    %v926 = vpop.f32.mrf.mxu0
    %v927 = vadd.f32 %v838, %v926
    %v928 = vpop.f32.mrf.mxu0
    %v929 = vadd.f32 %v840, %v928
    %930 = vmatmul.bf16.gmra.mxu0 %v499
    %v931 = vpop.f32.mrf.mxu0
    %v932 = vadd.f32 %v843, %v931
    %v933 = vpop.f32.mrf.mxu0
    %v934 = vadd.f32 %v845, %v933
    %935 = vdwg.mxu0
    %v936 = vpack.c.bf16 %v859, %v857
    %v937 = vpack.c.bf16 %v864, %v862
    %v938 = vpack.c.bf16 %v869, %v867
    %v939 = vpack.c.bf16 %v874, %v872
    %v940 = vpack.c.bf16 %v879, %v877
    %v941 = vpack.c.bf16 %v884, %v882
    %v942 = vpack.c.bf16 %v889, %v887
    %v943 = vpack.c.bf16 %v894, %v892
    %v944 = vpack.c.bf16 %v899, %v897
    %v945 = vpack.c.bf16 %v904, %v902
    %v946 = vpack.c.bf16 %v909, %v907
    %v947 = vpack.c.bf16 %v914, %v912
    %v948 = vpack.c.bf16 %v919, %v917
    %v949 = vpack.c.bf16 %v924, %v922
    %v950 = vpack.c.bf16 %v929, %v927
    %v951 = vpack.c.bf16 %v934, %v932
    %v952 = vld [vmem:[%s4] sm:$0xf]
    %v953 = vld [vmem:[%s4 + $0x4] sm:$0xf]
    %v954 = vld [vmem:[%s4 + $0x8] sm:$0xf]
    %v955 = vld [vmem:[%s4 + $0xc] sm:$0xf]
    %v956 = vld [vmem:[%s4 + $0x10] sm:$0xf]
    %v957 = vld [vmem:[%s4 + $0x14] sm:$0xf]
    %v958 = vld [vmem:[%s4 + $0x18] sm:$0xf]
    %v959 = vld [vmem:[%s4 + $0x1c] sm:$0xf]
    %v960 = vld [vmem:[%s4 + $0x20] sm:$0xf]
    %v961 = vld [vmem:[%s4 + $0x24] sm:$0xf]
    %v962 = vld [vmem:[%s4 + $0x28] sm:$0xf]
    %v963 = vld [vmem:[%s4 + $0x2c] sm:$0xf]
    %v964 = vld [vmem:[%s4 + $0x30] sm:$0xf]
    %v965 = vld [vmem:[%s4 + $0x34] sm:$0xf]
    %v966 = vld [vmem:[%s4 + $0x38] sm:$0xf]
    %v967 = vld [vmem:[%s4 + $0x3c] sm:$0xf]
    %v968 = vld [vmem:[%s5] sm:$0x1]
    %v970 = vperm.slane %v968, 0
    %v988 = vunpack.c.l.b16 %v952
    %v989 = vunpack.c.l.b16 %v953
    %v990 = vunpack.c.l.b16 %v954
    %v991 = vunpack.c.l.b16 %v955
    %v992 = vunpack.c.l.b16 %v956
    %v993 = vunpack.c.l.b16 %v957
    %v994 = vunpack.c.l.b16 %v958
    %v995 = vunpack.c.l.b16 %v959
    %v996 = vunpack.c.l.b16 %v960
    %v997 = vunpack.c.l.b16 %v961
    %v998 = vunpack.c.l.b16 %v962
    %v999 = vunpack.c.l.b16 %v963
    %v1000 = vunpack.c.l.b16 %v964
    %v1001 = vunpack.c.l.b16 %v965
    %v1002 = vunpack.c.l.b16 %v966
    %v1003 = vunpack.c.l.b16 %v967
    %v1004 = vpack.c.b16 %v989, %v988
    %v1005 = vpack.c.b16 %v991, %v990
    %v1006 = vpack.c.b16 %v993, %v992
    %v1007 = vpack.c.b16 %v995, %v994
    %v1008 = vpack.c.b16 %v997, %v996
    %v1009 = vpack.c.b16 %v999, %v998
    %v1010 = vpack.c.b16 %v1001, %v1000
    %v1011 = vpack.c.b16 %v1003, %v1002
    %1020 = vmatpush.bf16.msra.mxu0 %v1011
    %1021 = vmatpush.bf16.msra.mxu0 %v1010
    %1022 = vmatpush.bf16.msra.mxu0 %v1009
    %1023 = vmatpush.bf16.msra.mxu0 %v1008
    %1024 = vmatpush.bf16.msra.mxu0 %v1007
    %1025 = vmatpush.bf16.msra.mxu0 %v1006
    %1026 = vmatpush.bf16.msra.mxu0 %v1005
    %1027 = vmatpush.bf16.msra.mxu0 %v1004
    %1028 = vmatmul.bf16.gmra.mxu0 %v936
    %v1029 = vpop.f32.mrf.mxu0
    %v1030 = vadd.f32 %v970, %v1029
    %v1031 = vpop.f32.mrf.mxu0
    %v1032 = vadd.f32 %v970, %v1031
    %1033 = vmatmul.bf16.gmra.mxu0 %v937
    %v1034 = vpop.f32.mrf.mxu0
    %v1035 = vadd.f32 %v970, %v1034
    %v1036 = vpop.f32.mrf.mxu0
    %v1037 = vadd.f32 %v970, %v1036
    %1038 = vmatmul.bf16.gmra.mxu0 %v938
    %v1039 = vpop.f32.mrf.mxu0
    %v1040 = vadd.f32 %v970, %v1039
    %v1041 = vpop.f32.mrf.mxu0
    %v1042 = vadd.f32 %v970, %v1041
    %1043 = vmatmul.bf16.gmra.mxu0 %v939
    %v1044 = vpop.f32.mrf.mxu0
    %v1045 = vadd.f32 %v970, %v1044
    %v1046 = vpop.f32.mrf.mxu0
    %v1047 = vadd.f32 %v970, %v1046
    %1048 = vmatmul.bf16.gmra.mxu0 %v940
    %v1049 = vpop.f32.mrf.mxu0
    %v1050 = vadd.f32 %v970, %v1049
    %v1051 = vpop.f32.mrf.mxu0
    %v1052 = vadd.f32 %v970, %v1051
    %1053 = vmatmul.bf16.gmra.mxu0 %v941
    %v1054 = vpop.f32.mrf.mxu0
    %v1055 = vadd.f32 %v970, %v1054
    %v1056 = vpop.f32.mrf.mxu0
    %v1057 = vadd.f32 %v970, %v1056
    %1058 = vmatmul.bf16.gmra.mxu0 %v942
    %v1059 = vpop.f32.mrf.mxu0
    %v1060 = vadd.f32 %v970, %v1059
    %v1061 = vpop.f32.mrf.mxu0
    %v1062 = vadd.f32 %v970, %v1061
    %1063 = vmatmul.bf16.gmra.mxu0 %v943
    %v1064 = vpop.f32.mrf.mxu0
    %v1065 = vadd.f32 %v970, %v1064
    %v1066 = vpop.f32.mrf.mxu0
    %v1067 = vadd.f32 %v970, %v1066
    %1068 = vmatmul.bf16.gmra.mxu0 %v944
    %v1069 = vpop.f32.mrf.mxu0
    %v1070 = vadd.f32 %v970, %v1069
    %v1071 = vpop.f32.mrf.mxu0
    %v1072 = vadd.f32 %v970, %v1071
    %1073 = vmatmul.bf16.gmra.mxu0 %v945
    %v1074 = vpop.f32.mrf.mxu0
    %v1075 = vadd.f32 %v970, %v1074
    %v1076 = vpop.f32.mrf.mxu0
    %v1077 = vadd.f32 %v970, %v1076
    %1078 = vmatmul.bf16.gmra.mxu0 %v946
    %v1079 = vpop.f32.mrf.mxu0
    %v1080 = vadd.f32 %v970, %v1079
    %v1081 = vpop.f32.mrf.mxu0
    %v1082 = vadd.f32 %v970, %v1081
    %1083 = vmatmul.bf16.gmra.mxu0 %v947
    %v1084 = vpop.f32.mrf.mxu0
    %v1085 = vadd.f32 %v970, %v1084
    %v1086 = vpop.f32.mrf.mxu0
    %v1087 = vadd.f32 %v970, %v1086
    %1088 = vmatmul.bf16.gmra.mxu0 %v948
    %v1089 = vpop.f32.mrf.mxu0
    %v1090 = vadd.f32 %v970, %v1089
    %v1091 = vpop.f32.mrf.mxu0
    %v1092 = vadd.f32 %v970, %v1091
    %1093 = vmatmul.bf16.gmra.mxu0 %v949
    %v1094 = vpop.f32.mrf.mxu0
    %v1095 = vadd.f32 %v970, %v1094
    %v1096 = vpop.f32.mrf.mxu0
    %v1097 = vadd.f32 %v970, %v1096
    %1098 = vmatmul.bf16.gmra.mxu0 %v950
    %v1099 = vpop.f32.mrf.mxu0
    %v1100 = vadd.f32 %v970, %v1099
    %v1101 = vpop.f32.mrf.mxu0
    %v1102 = vadd.f32 %v970, %v1101
    %1103 = vmatmul.bf16.gmra.mxu0 %v951
    %v1104 = vpop.f32.mrf.mxu0
    %v1105 = vadd.f32 %v970, %v1104
    %v1106 = vpop.f32.mrf.mxu0
    %v1107 = vadd.f32 %v970, %v1106
    %1108 = vdwg.mxu0
    %v1109 = vpack.c.bf16 %v1032, %v1030
    %v1110 = vpack.c.bf16 %v1037, %v1035
    %v1111 = vpack.c.bf16 %v1042, %v1040
    %v1112 = vpack.c.bf16 %v1047, %v1045
    %v1113 = vpack.c.bf16 %v1052, %v1050
    %v1114 = vpack.c.bf16 %v1057, %v1055
    %v1115 = vpack.c.bf16 %v1062, %v1060
    %v1116 = vpack.c.bf16 %v1067, %v1065
    %v1117 = vpack.c.bf16 %v1072, %v1070
    %v1118 = vpack.c.bf16 %v1077, %v1075
    %v1119 = vpack.c.bf16 %v1082, %v1080
    %v1120 = vpack.c.bf16 %v1087, %v1085
    %v1121 = vpack.c.bf16 %v1092, %v1090
    %v1122 = vpack.c.bf16 %v1097, %v1095
    %v1123 = vpack.c.bf16 %v1102, %v1100
    %v1124 = vpack.c.bf16 %v1107, %v1105
    %v1125 = vld [vmem:[%s6] sm:$0xff]
    %v1126 = vld [vmem:[%s6 + $0x8] sm:$0xff]
    %v1129 = vunpack.c.l.b16 %v1125
    %v1130 = vunpack.c.h.b16 %v1125
    %v1131 = vunpack.c.l.b16 %v1126
    %v1132 = vunpack.c.h.b16 %v1126
    %v1133 = vpack.c.b16 %v1131, %v1129
    %v1134 = vpack.c.b16 %v1132, %v1130
    %1137 = vmatpush.bf16.msra.mxu0 %v1116
    %1138 = vmatpush.bf16.msra.mxu0 %v1115
    %1139 = vmatpush.bf16.msra.mxu0 %v1114
    %1140 = vmatpush.bf16.msra.mxu0 %v1113
    %1141 = vmatpush.bf16.msra.mxu0 %v1112
    %1142 = vmatpush.bf16.msra.mxu0 %v1111
    %1143 = vmatpush.bf16.msra.mxu0 %v1110
    %1144 = vmatpush.bf16.msra.mxu0 %v1109
    %1145 = vmatmul.bf16.gmra.mxu0 %v1133
    %v1146 = vpop.f32.mrf.mxu0
    %v1147 = vadd.f32 0.0, %v1146
    %v1148 = vpop.f32.mrf.mxu0
    %v1149 = vadd.f32 0.0, %v1148
    %1150 = vdwg.mxu0
    %1151 = vmatpush.bf16.msra.mxu0 %v1124
    %1152 = vmatpush.bf16.msra.mxu0 %v1123
    %1153 = vmatpush.bf16.msra.mxu0 %v1122
    %1154 = vmatpush.bf16.msra.mxu0 %v1121
    %1155 = vmatpush.bf16.msra.mxu0 %v1120
    %1156 = vmatpush.bf16.msra.mxu0 %v1119
    %1157 = vmatpush.bf16.msra.mxu0 %v1118
    %1158 = vmatpush.bf16.msra.mxu0 %v1117
    %1159 = vmatmul.bf16.gmra.mxu0 %v1134
    %v1160 = vpop.f32.mrf.mxu0
    %v1161 = vadd.f32 %v1147, %v1160
    %v1162 = vpop.f32.mrf.mxu0
    %v1163 = vadd.f32 %v1149, %v1162
    %1164 = vdwg.mxu0
    %v1165 = vpack.c.bf16 %v1163, %v1161
    %v1166 = vld [vmem:[%s7] sm:$0xf]
    %v1167 = vld [vmem:[%s7 + $0x4] sm:$0xf]
    %v1168 = vld [vmem:[%s7 + $0x8] sm:$0xf]
    %v1169 = vld [vmem:[%s7 + $0xc] sm:$0xf]
    %v1170 = vld [vmem:[%s7 + $0x10] sm:$0xf]
    %v1171 = vld [vmem:[%s7 + $0x14] sm:$0xf]
    %v1172 = vld [vmem:[%s7 + $0x18] sm:$0xf]
    %v1173 = vld [vmem:[%s7 + $0x1c] sm:$0xf]
    %v1174 = vld [vmem:[%s7 + $0x20] sm:$0xf]
    %v1175 = vld [vmem:[%s7 + $0x24] sm:$0xf]
    %v1176 = vld [vmem:[%s7 + $0x28] sm:$0xf]
    %v1177 = vld [vmem:[%s7 + $0x2c] sm:$0xf]
    %v1178 = vld [vmem:[%s7 + $0x30] sm:$0xf]
    %v1179 = vld [vmem:[%s7 + $0x34] sm:$0xf]
    %v1180 = vld [vmem:[%s7 + $0x38] sm:$0xf]
    %v1181 = vld [vmem:[%s7 + $0x3c] sm:$0xf]
    %v1182 = vld [vmem:[%s8] sm:$0x1]
    %v1184 = vperm.slane %v1182, 0
    %v1202 = vunpack.c.l.b16 %v1166
    %v1203 = vunpack.c.l.b16 %v1167
    %v1204 = vunpack.c.l.b16 %v1168
    %v1205 = vunpack.c.l.b16 %v1169
    %v1206 = vunpack.c.l.b16 %v1170
    %v1207 = vunpack.c.l.b16 %v1171
    %v1208 = vunpack.c.l.b16 %v1172
    %v1209 = vunpack.c.l.b16 %v1173
    %v1210 = vunpack.c.l.b16 %v1174
    %v1211 = vunpack.c.l.b16 %v1175
    %v1212 = vunpack.c.l.b16 %v1176
    %v1213 = vunpack.c.l.b16 %v1177
    %v1214 = vunpack.c.l.b16 %v1178
    %v1215 = vunpack.c.l.b16 %v1179
    %v1216 = vunpack.c.l.b16 %v1180
    %v1217 = vunpack.c.l.b16 %v1181
    %v1218 = vpack.c.b16 %v1203, %v1202
    %v1219 = vpack.c.b16 %v1205, %v1204
    %v1220 = vpack.c.b16 %v1207, %v1206
    %v1221 = vpack.c.b16 %v1209, %v1208
    %v1222 = vpack.c.b16 %v1211, %v1210
    %v1223 = vpack.c.b16 %v1213, %v1212
    %v1224 = vpack.c.b16 %v1215, %v1214
    %v1225 = vpack.c.b16 %v1217, %v1216
    %1234 = vmatpush.bf16.msra.mxu0 %v1225
    %1235 = vmatpush.bf16.msra.mxu0 %v1224
    %1236 = vmatpush.bf16.msra.mxu0 %v1223
    %1237 = vmatpush.bf16.msra.mxu0 %v1222
    %1238 = vmatpush.bf16.msra.mxu0 %v1221
    %1239 = vmatpush.bf16.msra.mxu0 %v1220
    %1240 = vmatpush.bf16.msra.mxu0 %v1219
    %1241 = vmatpush.bf16.msra.mxu0 %v1218
    %1242 = vmatmul.bf16.gmra.mxu0 %v1165
    %v1243 = vpop.f32.mrf.mxu0
    %v1244 = vadd.f32 %v1184, %v1243
    %v1245 = vpop.f32.mrf.mxu0
    %v1246 = vadd.f32 %v1184, %v1245
    %1247 = vdwg.mxu0
    %v1248 = vmax.f32 %v1244, 0.0
    %v1249 = vmax.f32 %v1246, 0.0
    %v1250 = vpack.c.bf16 %v1249, %v1248
    %v1251 = vld [vmem:[%s9] sm:$0xf]
    %v1252 = vld [vmem:[%s9 + $0x4] sm:$0xf]
    %v1253 = vld [vmem:[%s9 + $0x8] sm:$0xf]
    %v1254 = vld [vmem:[%s9 + $0xc] sm:$0xf]
    %v1255 = vld [vmem:[%s9 + $0x10] sm:$0xf]
    %v1256 = vld [vmem:[%s9 + $0x14] sm:$0xf]
    %v1257 = vld [vmem:[%s9 + $0x18] sm:$0xf]
    %v1258 = vld [vmem:[%s9 + $0x1c] sm:$0xf]
    %v1259 = vld [vmem:[%s9 + $0x20] sm:$0xf]
    %v1260 = vld [vmem:[%s9 + $0x24] sm:$0xf]
    %v1261 = vld [vmem:[%s9 + $0x28] sm:$0xf]
    %v1262 = vld [vmem:[%s9 + $0x2c] sm:$0xf]
    %v1263 = vld [vmem:[%s9 + $0x30] sm:$0xf]
    %v1264 = vld [vmem:[%s9 + $0x34] sm:$0xf]
    %v1265 = vld [vmem:[%s9 + $0x38] sm:$0xf]
    %v1266 = vld [vmem:[%s9 + $0x3c] sm:$0xf]
    %v1267 = vld [vmem:[%s10] sm:$0x1]
    %v1269 = vperm.slane %v1267, 0
    %v1287 = vunpack.c.l.b16 %v1251
    %v1288 = vunpack.c.l.b16 %v1252
    %v1289 = vunpack.c.l.b16 %v1253
    %v1290 = vunpack.c.l.b16 %v1254
    %v1291 = vunpack.c.l.b16 %v1255
    %v1292 = vunpack.c.l.b16 %v1256
    %v1293 = vunpack.c.l.b16 %v1257
    %v1294 = vunpack.c.l.b16 %v1258
    %v1295 = vunpack.c.l.b16 %v1259
    %v1296 = vunpack.c.l.b16 %v1260
    %v1297 = vunpack.c.l.b16 %v1261
    %v1298 = vunpack.c.l.b16 %v1262
    %v1299 = vunpack.c.l.b16 %v1263
    %v1300 = vunpack.c.l.b16 %v1264
    %v1301 = vunpack.c.l.b16 %v1265
    %v1302 = vunpack.c.l.b16 %v1266
    %v1303 = vpack.c.b16 %v1288, %v1287
    %v1304 = vpack.c.b16 %v1290, %v1289
    %v1305 = vpack.c.b16 %v1292, %v1291
    %v1306 = vpack.c.b16 %v1294, %v1293
    %v1307 = vpack.c.b16 %v1296, %v1295
    %v1308 = vpack.c.b16 %v1298, %v1297
    %v1309 = vpack.c.b16 %v1300, %v1299
    %v1310 = vpack.c.b16 %v1302, %v1301
    %1319 = vmatpush.bf16.msra.mxu0 %v1310
    %1320 = vmatpush.bf16.msra.mxu0 %v1309
    %1321 = vmatpush.bf16.msra.mxu0 %v1308
    %1322 = vmatpush.bf16.msra.mxu0 %v1307
    %1323 = vmatpush.bf16.msra.mxu0 %v1306
    %1324 = vmatpush.bf16.msra.mxu0 %v1305
    %1325 = vmatpush.bf16.msra.mxu0 %v1304
    %1326 = vmatpush.bf16.msra.mxu0 %v1303
    %1327 = vmatmul.bf16.gmra.mxu0 %v1250
    %v1328 = vpop.f32.mrf.mxu0
    %v1329 = vadd.f32 %v1269, %v1328
    %v1330 = vpop.f32.mrf.mxu0
    %v1331 = vadd.f32 %v1269, %v1330
    %1332 = vdwg.mxu0
    %v1333 = vlaneseq
    %v1334 = vand.u32 %v1333, 127
    %vm1335 = vcmp.lt.s32.totalorder %v1334, 8
    %v1336 = vsel %vm1335, %v1329, -1e+30
    %v1337 = vsel %vm1335, %v1331, -1e+30
    %1338 = vmax.xlane.f32.xlu0 %v1336
    %v1339 = vpop.xlane.xlu0 %1338
    %1340 = vmax.xlane.f32.xlu0 %v1337
    %v1341 = vpop.xlane.xlu0 %1340
    %v1342 = vsub.f32 %v1336, %v1339
    %v1343 = vsub.f32 %v1337, %v1341
    %v1344 = vmul.f32 %v1342, 1.442695
    %v1345 = vpow.pop %v1344
    %v1346 = vmul.f32 %v1343, 1.442695
    %v1347 = vpow.pop %v1346
    %1348 = vadd.xlane.f32.xlu0 %v1345
    %v1349 = vpop.xlane.xlu0 %1348
    %1350 = vadd.xlane.f32.xlu0 %v1347
    %v1351 = vpop.xlane.xlu0 %1350
    %v1352 = vlog2.pop %v1349
    %v1353 = vmul.f32 %v1352, 0.6931472
    %v1354 = vlog2.pop %v1351
    %v1355 = vmul.f32 %v1354, 0.6931472
    %v1356 = vsub.f32 %v1342, %v1353
    %v1357 = vsub.f32 %v1343, %v1355
    %1358 = vst [vmem:[#allocation2] sm:$0xff] %v1356
    %1359 = vst [vmem:[#allocation2 + $0x8] sm:$0xff] %v1357
    // Predicated region
    $region46: #{pyg_model_forward.1} parent=1 // pred_check
      _
    $region47: #{pyg_model_forward.1} parent=1 // pred_check_branch
      %1361 = sbr.rel (0) target = $region49
    $region48: #{pyg_model_forward.1} parent=1 // pred_region
      %1363 = vsyncadd [#allocation3], 0
      %s1364 = sshll.u32 [#allocation2], 4
      %s1365 = int_to_ptr.vmem [resolvable:$true] %s1364
      %s1366 = sshll.u32 %s11, 4
      %s1367 = int_to_ptr.hbm [resolvable:$true] %s1366
      %1372 = dma.vmem_to_hbm [thread:$0]  %s1365, 256, %s1367, [#allocation3], 128, 128, 8
    $region49: #{pyg_model_forward.1} parent=1 // pred_fallthru
      _
    // Predicated region
    $region50: #{pyg_model_forward.1} parent=1 // pred_check
      _
    $region51: #{pyg_model_forward.1} parent=1 // pred_check_branch
      %1374 = sbr.rel (0) target = $region53
    $region52: #{pyg_model_forward.1} parent=1 // pred_region
      %1376 = dma.done [#allocation3], 256
    $region53: #{pyg_model_forward.1} parent=1 // pred_fallthru
      _
    %1377 = vsyncpa [#allocation3], 1

</llo_original>
